<compile_context>
chip_gen: v5e
topology: v5e:2x2
jax: 0.10.0
libtpu: 0.0.40
codegen_flags: <defaults>
</compile_context>

<pallas_src>
import math
import functools

import jax
import jax.numpy as jnp
from jax.experimental import pallas as pl
from jax.experimental.pallas import tpu as pltpu

_LANE = 128
_OUT_W = 128
_SUB = 8


def _round_up(a, b):
    return (a + b - 1) // b * b


def _softplus(z):
    # numerically stable softplus; note -logsigmoid(z) == softplus(-z)
    return jnp.maximum(z, 0.0) + jnp.log1p(jnp.exp(-jnp.abs(z)))


def _bcnre_kernel(theta_ref, xT_ref, w1tT_ref, w1xT_ref, b1_ref, w2T_ref,
                  b2_ref, w3_ref, b3_ref, out_ref, *,
                  K, TILE_N, N, shift, cd, W_LOAD, resident):
    i = pl.program_id(0)

    # ---- theta window for this tile: (D, W_LOAD), lane-aligned load ----
    if resident:
        base = pl.multiple_of(i * TILE_N, _LANE)
        t_win = theta_ref[:, pl.ds(base, W_LOAD)]        # (D, W_LOAD)
    else:
        t_win = theta_ref[0]                             # (D, W_LOAD)

    # ---- layer-1 x-part: once per sample (f32 accumulation) ----
    x1 = jnp.dot(w1xT_ref[...], xT_ref[...],
                 preferred_element_type=jnp.float32) + b1_ref[...]    # (H, TILE_N) f32

    w1t = w1tT_ref[...]
    w2t = w2T_ref[...]
    b2c = b2_ref[...]
    w3c = w3_ref[...]
    b3c = b3_ref[...]

    def window_logits(off):
        # offset the SMALL D-row operand (cheap lane shuffle on D sublanes)
        t_k = t_win[:, off: off + TILE_N]                              # (D, TILE_N)
        t1 = jnp.dot(w1t, t_k, preferred_element_type=jnp.float32)     # (H, TILE_N)
        h1 = jnp.maximum(t1 + x1, 0.0)                                 # f32
        h1m = h1 if cd == jnp.float32 else h1.astype(cd)
        h2 = jnp.dot(w2t, h1m, preferred_element_type=jnp.float32)     # (H, TILE_N)
        h2 = jnp.maximum(h2 + b2c, 0.0)                                # f32
        # layer 3 (output width 1): VPU multiply + sublane reduce (lane dense)
        return jnp.sum(h2 * w3c, axis=0, keepdims=True) + b3c          # (1, TILE_N)

    def lse(cols):
        m = cols[0]
        for c in cols[1:]:
            m = jnp.maximum(m, c)
        s = jnp.zeros_like(m)
        for c in cols:
            s = s + jnp.exp(c - m)
        return m + jnp.log(s)

    # s = 0 : Theta_k[n]  = theta[(n + k)     % N] -> window offset K + k
    # s = 1 : Theta'_k[n] = theta[(n - K + k) % N] -> window offset k
    log_r = lse([window_logits(K + k) for k in range(K)]) + shift       # (1, TILE_N)
    log_rp = lse([window_logits(k) for k in range(K)]) + shift          # (1, TILE_N)

    sp_r = _softplus(-log_r)       # -logsigmoid(log_r)
    sp_rp = _softplus(log_rp)      # -logsigmoid(-log_r')

    # ---- padding-lane mask (global n >= N) ----
    lane = jax.lax.broadcasted_iota(jnp.int32, (1, TILE_N), 1)
    mask = ((lane + i * TILE_N) < N).astype(jnp.float32)

    v1 = sp_r * mask
    v0 = sp_rp * mask
    # sigmoid(log_r) + sigmoid(log_r') - 1 == exp(-sp_r) - exp(-sp_rp)
    vb = (jnp.exp(-sp_r) - jnp.exp(-sp_rp)) * mask

    # ---- fused per-tile reductions -> one unmasked (8, 128) store ----
    stacked = jnp.concatenate(
        [v1, v0, vb, jnp.zeros((_SUB - 3, TILE_N), jnp.float32)], axis=0)  # (8, TILE_N)
    col = jnp.sum(stacked, axis=1, keepdims=True)                          # (8, 1)
    out_lane = jax.lax.broadcasted_iota(jnp.int32, (_SUB, _OUT_W), 1)
    out_ref[...] = jnp.where(out_lane == 0, col, 0.0)


def bcnre_loss_pallas(theta, x, params, *, cardinality=2, gamma=1.0, lmbda=100.0,
                      matmul_dtype=jnp.float32, tile_n=1024,
                      resident_theta_max_bytes=8 * 1024 * 1024):
    """BCNRELoss.forward(theta, x) with a synthetic MLP estimator (Pallas TPU)."""
    K = int(cardinality)
    N, D = theta.shape
    Nx, L = x.shape
    assert Nx == N and N >= 2 * K
    assert 2 * K <= _LANE, "cardinality too large for the 128-lane window headroom"
    w1, b1, w2, b2, w3, b3 = params
    H = w1.shape[1]

    f32 = jnp.float32
    cd = matmul_dtype
    stream_dt = cd          # streamed per-tile inputs (theta window / x^T) match MXU dtype

    # ---- tile selection: lane-aligned; prefer >= 2 grid steps (v7x: 2 TCs) ----
    n128 = _round_up(N, _LANE)
    TILE_N = min(_round_up(tile_n, _LANE), n128)
    if TILE_N >= n128 and n128 >= 2 * _LANE:
        TILE_N = _round_up(n128 // 2, _LANE)
    num_tiles = -(-N // TILE_N)
    N_pad = num_tiles * TILE_N
    W_LOAD = TILE_N + _LANE               # aligned window width (2K - 1 < 128)
    W_res = N_pad + _LANE

    theta = theta.astype(f32)
    x = x.astype(f32)

    # circular extension: theta_ext[m] = theta[(m - K) % N], m in [0, N + 2K - 2]
    theta_ext = jnp.concatenate([theta[N - K:], theta, theta[:K - 1]], axis=0)   # (N+2K-1, D)
    theta_ext = jnp.pad(theta_ext, ((0, W_res - (N + 2 * K - 1)), (0, 0)))       # (W_res, D)
    theta_ext_t = theta_ext.T.astype(stream_dt)                                  # (D, W_res)

    itemsize = jnp.dtype(stream_dt).itemsize
    resident = (D * W_res * itemsize) <= resident_theta_max_bytes
    if resident:
        theta_in = theta_ext_t
        theta_spec = pl.BlockSpec((D, W_res), lambda i: (0, 0))        # resident, no per-tile DMA
    else:
        # TODO(synk): above the residency cap we fall back to host-stacked overlapping
        # windows (duplicate theta in HBM); a manual make_async_copy double-buffer of the
        # window would avoid the duplicate.
        theta_in = jnp.stack(
            [theta_ext_t[:, i * TILE_N: i * TILE_N + W_LOAD] for i in range(num_tiles)],
            axis=0)                                                    # (num_tiles, D, W_LOAD)
        theta_spec = pl.BlockSpec((1, D, W_LOAD), lambda i: (i, 0, 0))

    xT = jnp.pad(x.T, ((0, 0), (0, N_pad - N))).astype(stream_dt)      # (L, N_pad)

    # weights in the samples-on-lanes layout; w1 split into theta / x parts.
    # MXU operands pre-cast ONCE in the wrapper; biases / w3 stay f32.
    w1 = w1.astype(f32)
    w1tT = w1[:D].T.astype(cd)            # (H, D)
    w1xT = w1[D:].T.astype(cd)            # (H, L)
    b1c = jnp.reshape(b1.astype(f32), (H, 1))
    w2T = w2.astype(f32).T.astype(cd)     # (H, H)
    b2c = jnp.reshape(b2.astype(f32), (H, 1))
    w3c = jnp.reshape(w3.astype(f32), (H, 1))
    b3c = jnp.reshape(b3.astype(f32), (1, 1))

    shift = float(math.log(gamma / K))

    kernel = functools.partial(_bcnre_kernel, K=K, TILE_N=TILE_N, N=N, shift=shift,
                               cd=cd, W_LOAD=W_LOAD, resident=resident)

    grid_spec = pltpu.PrefetchScalarGridSpec(
        num_scalar_prefetch=0,
        grid=(num_tiles,),
        in_specs=[
            theta_spec,                                          # theta_ext^T (resident or windowed)
            pl.BlockSpec((L, TILE_N), lambda i: (0, i)),         # x^T tile
            pl.BlockSpec((H, D), lambda i: (0, 0)),              # resident weights ...
            pl.BlockSpec((H, L), lambda i: (0, 0)),
            pl.BlockSpec((H, 1), lambda i: (0, 0)),
            pl.BlockSpec((H, H), lambda i: (0, 0)),
            pl.BlockSpec((H, 1), lambda i: (0, 0)),
            pl.BlockSpec((H, 1), lambda i: (0, 0)),
            pl.BlockSpec((1, 1), lambda i: (0, 0)),
        ],
        out_specs=pl.BlockSpec((_SUB, _OUT_W), lambda i: (i, 0)),
    )

    flops = int(2 * N_pad * H * L
                + num_tiles * 2 * K * (2 * TILE_N * H * D
                                       + 2 * TILE_N * H * H
                                       + 2 * TILE_N * H))
    bytes_accessed = int(itemsize * (theta_in.size + xT.size
                                     + w1tT.size + w1xT.size + w2T.size)
                         + 4 * (b1c.size + b2c.size + w3c.size + b3c.size
                                + num_tiles * _SUB * _OUT_W))
    transcendentals = int(N_pad * (2 * K + 8))

    partial = pl.pallas_call(
        kernel,
        out_shape=jax.ShapeDtypeStruct((num_tiles * _SUB, _OUT_W), jnp.float32),
        grid_spec=grid_spec,
        compiler_params=pltpu.CompilerParams(
            dimension_semantics=("parallel",),       # independent tiles: 2 TCs on v7x
            vmem_limit_bytes=32 * 1024 * 1024,       # within v7x's 64 MiB VMEM
        ),
        cost_estimate=pl.CostEstimate(flops=flops,
                                      transcendentals=transcendentals,
                                      bytes_accessed=bytes_accessed),
    )(theta_in, xT, w1tT, w1xT, b1c, w2T, b2c, w3c, b3c)

    # tiny scalar epilogue in plain JAX (keeps the grid axis fully parallel)
    sums = jnp.sum(partial.reshape(num_tiles, _SUB, _OUT_W), axis=(0, 2))   # (8,)
    l1 = sums[0] / N
    l0 = sums[1] / N
    lb_mean = sums[2] / N
    return (gamma * l1 + l0) / (gamma + 1.0) + lmbda * lb_mean ** 2


def bcnre_loss_ref(theta, x, params, *, cardinality=2, gamma=1.0, lmbda=100.0):
    """Pure-JAX reference of the same forward pass (correctness check)."""
    K = int(cardinality)
    N, D = theta.shape
    _, L = x.shape
    w1, b1, w2, b2, w3, b3 = params

    theta_ext = jnp.concatenate([theta, theta[:K - 1]], axis=0)
    idx = jnp.arange(K)[:, None] + jnp.arange(N)[None, :]
    Theta = theta_ext[idx]                                   # (K, N, D)
    Theta_prime = jnp.roll(Theta, K, axis=1)                 # torch.roll(theta, K, dims=1)
    theta_stack = jnp.stack([Theta, Theta_prime], axis=0)    # (2, K, N, D)
    x_b = jnp.broadcast_to(x[None, None], (2, K, N, L))
    feats = jnp.concatenate([theta_stack, x_b], axis=-1)     # (2, K, N, D+L)

    h1 = jax.nn.relu(feats @ w1 + b1)
    h2 = jax.nn.relu(h1 @ w2 + b2)
    logits = (h2 @ w3 + b3)[..., 0]                          # (2, K, N)

    shift = math.log(gamma / K)
    log_r = jax.scipy.special.logsumexp(logits[0], axis=0) + shift
    log_rp = jax.scipy.special.logsumexp(logits[1], axis=0) + shift

    l1 = -jnp.mean(jax.nn.log_sigmoid(log_r))
    l0 = -jnp.mean(jax.nn.log_sigmoid(-log_rp))
    lb = jnp.square(jnp.mean(jax.nn.sigmoid(log_r) + jax.nn.sigmoid(log_rp) - 1.0))
    return (gamma * l1 + l0) / (gamma + 1.0) + lmbda * lb


def _make_params(key, D, L, H):
    k1, k2, k3, k4, k5, k6 = jax.random.split(key, 6)
    F_in = D + L
    w1 = 0.2 * jax.random.normal(k1, (F_in, H), jnp.float32)
    b1 = 0.1 * jax.random.normal(k2, (H,), jnp.float32)
    w2 = 0.2 * jax.random.normal(k3, (H, H), jnp.float32)
    b2 = 0.1 * jax.random.normal(k4, (H,), jnp.float32)
    w3 = 0.2 * jax.random.normal(k5, (H, 1), jnp.float32)
    b3 = 0.1 * jax.random.normal(k6, (1,), jnp.float32)
    return (w1, b1, w2, b2, w3, b3)


if __name__ == "__main__":
    key = jax.random.PRNGKey(0)
    k_theta, k_x, k_p, k_theta2, k_x2, k_p2 = jax.random.split(key, 6)

    # --- case 1: small shapes, single tile, resident theta ---
    N, D, L, H, K = 8, 4, 8, 32, 2
    gamma, lmbda = 1.0, 100.0
    theta = jax.random.normal(k_theta, (N, D), jnp.float32)
    x = jax.random.normal(k_x, (N, L), jnp.float32)
    params = _make_params(k_p, D, L, H)

    ref = jax.block_until_ready(
        bcnre_loss_ref(theta, x, params, cardinality=K, gamma=gamma, lmbda=lmbda))
    loss = jax.block_until_ready(
        bcnre_loss_pallas(theta, x, params, cardinality=K, gamma=gamma, lmbda=lmbda))
    assert jnp.isfinite(loss)
    assert abs(float(loss) - float(ref)) < 1e-4, (float(loss), float(ref))

    # bf16 MXU operands (f32 accumulation / epilogue): runs and stays close.
    loss_bf16 = jax.block_until_ready(
        bcnre_loss_pallas(theta, x, params, cardinality=K, gamma=gamma, lmbda=lmbda,
                          matmul_dtype=jnp.bfloat16))
    assert jnp.isfinite(loss_bf16)
    assert abs(float(loss_bf16) - float(ref)) < 0.1 * (1.0 + abs(float(ref)))

    # --- case 2: N not a multiple of the tile -> multi-tile grid + lane masking ---
    N2, D2, L2, H2, K2 = 300, 4, 8, 32, 2
    theta2 = jax.random.normal(k_theta2, (N2, D2), jnp.float32)
    x2 = jax.random.normal(k_x2, (N2, L2), jnp.float32)
    params2 = _make_params(k_p2, D2, L2, H2)

    ref2 = jax.block_until_ready(
        bcnre_loss_ref(theta2, x2, params2, cardinality=K2, gamma=gamma, lmbda=lmbda))

    # explicit small tile (3 grid steps)
    loss2 = jax.block_until_ready(
        bcnre_loss_pallas(theta2, x2, params2, cardinality=K2, gamma=gamma, lmbda=lmbda,
                          tile_n=128))
    assert jnp.isfinite(loss2)
    assert abs(float(loss2) - float(ref2)) < 1e-4, (float(loss2), float(ref2))

    # default tile_n: exercises the ">= 2 grid steps" split (2 tiles of 256)
    loss2b = jax.block_until_ready(
        bcnre_loss_pallas(theta2, x2, params2, cardinality=K2, gamma=gamma, lmbda=lmbda))
    assert abs(float(loss2b) - float(ref2)) < 1e-4, (float(loss2b), float(ref2))

    # forced non-resident fallback path (host-stacked windows) also runs & matches
    loss2c = jax.block_until_ready(
        bcnre_loss_pallas(theta2, x2, params2, cardinality=K2, gamma=gamma, lmbda=lmbda,
                          tile_n=128, resident_theta_max_bytes=0))
    assert abs(float(loss2c) - float(ref2)) < 1e-4, (float(loss2c), float(ref2))

    print("KERNEL_OK")
</pallas_src>

<mosaic_0001>
module attributes {stable_mosaic.version = 11 : i64} {
  func.func @_bcnre_kernel(%arg0: i32, %arg1: memref<4x256xf32, #tpu.memory_space<vmem>>, %arg2: memref<8x128xf32, #tpu.memory_space<vmem>>, %arg3: memref<32x4xf32, #tpu.memory_space<vmem>>, %arg4: memref<32x8xf32, #tpu.memory_space<vmem>>, %arg5: memref<32x1xf32, #tpu.memory_space<vmem>>, %arg6: memref<32x32xf32, #tpu.memory_space<vmem>>, %arg7: memref<32x1xf32, #tpu.memory_space<vmem>>, %arg8: memref<32x1xf32, #tpu.memory_space<vmem>>, %arg9: memref<1x1xf32, #tpu.memory_space<vmem>>, %arg10: memref<8x128xf32, #tpu.memory_space<vmem>>) attributes {dimension_semantics = [#tpu.dimension_semantics<parallel>], iteration_bounds = array<i64: 1>, scalar_prefetch = 0 : i64, scratch_operands = 0 : i64, tpu.core_type = #tpu.core_type<tc>, window_params = [{pipeline_mode = #tpu.pipeline_mode<synchronous>, transform_indices = @transform_0, window_bounds = array<i64: 4, 256>}, {transform_indices = @transform_1, window_bounds = array<i64: 8, 128>}, {pipeline_mode = #tpu.pipeline_mode<synchronous>, transform_indices = @transform_2, window_bounds = array<i64: 32, 4>}, {pipeline_mode = #tpu.pipeline_mode<synchronous>, transform_indices = @transform_3, window_bounds = array<i64: 32, 8>}, {pipeline_mode = #tpu.pipeline_mode<synchronous>, transform_indices = @transform_4, window_bounds = array<i64: 32, 1>}, {pipeline_mode = #tpu.pipeline_mode<synchronous>, transform_indices = @transform_5, window_bounds = array<i64: 32, 32>}, {pipeline_mode = #tpu.pipeline_mode<synchronous>, transform_indices = @transform_6, window_bounds = array<i64: 32, 1>}, {pipeline_mode = #tpu.pipeline_mode<synchronous>, transform_indices = @transform_7, window_bounds = array<i64: 32, 1>}, {pipeline_mode = #tpu.pipeline_mode<synchronous>, transform_indices = @transform_8, window_bounds = array<i64: 1, 1>}, {transform_indices = @transform_9, window_bounds = array<i64: 8, 128>}]} {
    %c128_i32 = arith.constant 128 : i32
    %0 = arith.muli %arg0, %c128_i32 : i32
    %1 = tpu.assume_multiple %0, 128 : i32
    %c0 = arith.constant 0 : index
    %2 = arith.index_cast %1 : i32 to index
    %3 = vector.load %arg1[%c0, %2] : memref<4x256xf32, #tpu.memory_space<vmem>>, vector<4x256xf32>
    %c0_0 = arith.constant 0 : index
    %c0_1 = arith.constant 0 : index
    %4 = vector.load %arg4[%c0_0, %c0_1] : memref<32x8xf32, #tpu.memory_space<vmem>>, vector<32x8xf32>
    %c0_2 = arith.constant 0 : index
    %c0_3 = arith.constant 0 : index
    %5 = vector.load %arg2[%c0_2, %c0_3] : memref<8x128xf32, #tpu.memory_space<vmem>>, vector<8x128xf32>
    %cst = arith.constant dense<0.000000e+00> : vector<32x128xf32>
    %6 = tpu.matmul %4, %5, %cst {dimension_numbers = #tpu.dot_dimension_numbers<[1], [0], [0], [1], [0, 0, 1, 1], [], []>} : vector<32x8xf32>, vector<8x128xf32>, vector<32x128xf32> -> vector<32x128xf32>
    %c0_4 = arith.constant 0 : index
    %c0_5 = arith.constant 0 : index
    %7 = vector.load %arg5[%c0_4, %c0_5] : memref<32x1xf32, #tpu.memory_space<vmem>>, vector<32x1xf32>
    %8 = vector.broadcast %7 : vector<32x1xf32> to vector<32x128xf32>
    %9 = arith.addf %6, %8 : vector<32x128xf32>
    %c0_6 = arith.constant 0 : index
    %c0_7 = arith.constant 0 : index
    %10 = vector.load %arg3[%c0_6, %c0_7] : memref<32x4xf32, #tpu.memory_space<vmem>>, vector<32x4xf32>
    %c0_8 = arith.constant 0 : index
    %c0_9 = arith.constant 0 : index
    %11 = vector.load %arg6[%c0_8, %c0_9] : memref<32x32xf32, #tpu.memory_space<vmem>>, vector<32x32xf32>
    %c0_10 = arith.constant 0 : index
    %c0_11 = arith.constant 0 : index
    %12 = vector.load %arg7[%c0_10, %c0_11] : memref<32x1xf32, #tpu.memory_space<vmem>>, vector<32x1xf32>
    %c0_12 = arith.constant 0 : index
    %c0_13 = arith.constant 0 : index
    %13 = vector.load %arg8[%c0_12, %c0_13] : memref<32x1xf32, #tpu.memory_space<vmem>>, vector<32x1xf32>
    %c0_14 = arith.constant 0 : index
    %c0_15 = arith.constant 0 : index
    %14 = vector.load %arg9[%c0_14, %c0_15] : memref<1x1xf32, #tpu.memory_space<vmem>>, vector<1x1xf32>
    %15 = vector.extract_strided_slice %3 {offsets = [0, 2], sizes = [4, 128], strides = [1, 1]} : vector<4x256xf32> to vector<4x128xf32>
    %cst_16 = arith.constant dense<0.000000e+00> : vector<32x128xf32>
    %16 = tpu.matmul %10, %15, %cst_16 {dimension_numbers = #tpu.dot_dimension_numbers<[1], [0], [0], [1], [0, 0, 1, 1], [], []>} : vector<32x4xf32>, vector<4x128xf32>, vector<32x128xf32> -> vector<32x128xf32>
    %17 = arith.addf %16, %9 : vector<32x128xf32>
    %cst_17 = arith.constant 0.000000e+00 : f32
    %18 = vector.broadcast %cst_17 : f32 to vector<32x128xf32>
    %19 = arith.maximumf %17, %18 : vector<32x128xf32>
    %cst_18 = arith.constant dense<0.000000e+00> : vector<32x128xf32>
    %20 = tpu.matmul %11, %19, %cst_18 {dimension_numbers = #tpu.dot_dimension_numbers<[1], [0], [0], [1], [0, 0, 1, 1], [], []>} : vector<32x32xf32>, vector<32x128xf32>, vector<32x128xf32> -> vector<32x128xf32>
    %21 = vector.broadcast %12 : vector<32x1xf32> to vector<32x128xf32>
    %22 = arith.addf %20, %21 : vector<32x128xf32>
    %cst_19 = arith.constant 0.000000e+00 : f32
    %23 = vector.broadcast %cst_19 : f32 to vector<32x128xf32>
    %24 = arith.maximumf %22, %23 : vector<32x128xf32>
    %25 = vector.broadcast %13 : vector<32x1xf32> to vector<32x128xf32>
    %26 = arith.mulf %24, %25 : vector<32x128xf32>
    %cst_20 = arith.constant dense<0.000000e+00> : vector<128xf32>
    %27 = vector.multi_reduction <add>, %26, %cst_20 [0] : vector<32x128xf32> to vector<128xf32>
    %28 = vector.shape_cast %27 : vector<128xf32> to vector<1x128xf32>
    %29 = vector.broadcast %14 : vector<1x1xf32> to vector<1x128xf32>
    %30 = arith.addf %28, %29 : vector<1x128xf32>
    %31 = vector.extract_strided_slice %3 {offsets = [0, 3], sizes = [4, 128], strides = [1, 1]} : vector<4x256xf32> to vector<4x128xf32>
    %cst_21 = arith.constant dense<0.000000e+00> : vector<32x128xf32>
    %32 = tpu.matmul %10, %31, %cst_21 {dimension_numbers = #tpu.dot_dimension_numbers<[1], [0], [0], [1], [0, 0, 1, 1], [], []>} : vector<32x4xf32>, vector<4x128xf32>, vector<32x128xf32> -> vector<32x128xf32>
    %33 = arith.addf %32, %9 : vector<32x128xf32>
    %cst_22 = arith.constant 0.000000e+00 : f32
    %34 = vector.broadcast %cst_22 : f32 to vector<32x128xf32>
    %35 = arith.maximumf %33, %34 : vector<32x128xf32>
    %cst_23 = arith.constant dense<0.000000e+00> : vector<32x128xf32>
    %36 = tpu.matmul %11, %35, %cst_23 {dimension_numbers = #tpu.dot_dimension_numbers<[1], [0], [0], [1], [0, 0, 1, 1], [], []>} : vector<32x32xf32>, vector<32x128xf32>, vector<32x128xf32> -> vector<32x128xf32>
    %37 = vector.broadcast %12 : vector<32x1xf32> to vector<32x128xf32>
    %38 = arith.addf %36, %37 : vector<32x128xf32>
    %cst_24 = arith.constant 0.000000e+00 : f32
    %39 = vector.broadcast %cst_24 : f32 to vector<32x128xf32>
    %40 = arith.maximumf %38, %39 : vector<32x128xf32>
    %41 = vector.broadcast %13 : vector<32x1xf32> to vector<32x128xf32>
    %42 = arith.mulf %40, %41 : vector<32x128xf32>
    %cst_25 = arith.constant dense<0.000000e+00> : vector<128xf32>
    %43 = vector.multi_reduction <add>, %42, %cst_25 [0] : vector<32x128xf32> to vector<128xf32>
    %44 = vector.shape_cast %43 : vector<128xf32> to vector<1x128xf32>
    %45 = vector.broadcast %14 : vector<1x1xf32> to vector<1x128xf32>
    %46 = arith.addf %44, %45 : vector<1x128xf32>
    %47 = arith.maximumf %30, %46 : vector<1x128xf32>
    %cst_26 = arith.constant 0.000000e+00 : f32
    %48 = vector.broadcast %cst_26 : f32 to vector<1x128xf32>
    %49 = arith.subf %30, %47 : vector<1x128xf32>
    %50 = math.exp %49 : vector<1x128xf32>
    %51 = arith.addf %48, %50 : vector<1x128xf32>
    %52 = arith.subf %46, %47 : vector<1x128xf32>
    %53 = math.exp %52 : vector<1x128xf32>
    %54 = arith.addf %51, %53 : vector<1x128xf32>
    %55 = math.log %54 : vector<1x128xf32>
    %56 = arith.addf %47, %55 : vector<1x128xf32>
    %cst_27 = arith.constant -0.693147182 : f32
    %57 = vector.broadcast %cst_27 : f32 to vector<1x128xf32>
    %58 = arith.addf %56, %57 : vector<1x128xf32>
    %59 = vector.extract_strided_slice %3 {offsets = [0, 0], sizes = [4, 128], strides = [1, 1]} : vector<4x256xf32> to vector<4x128xf32>
    %cst_28 = arith.constant dense<0.000000e+00> : vector<32x128xf32>
    %60 = tpu.matmul %10, %59, %cst_28 {dimension_numbers = #tpu.dot_dimension_numbers<[1], [0], [0], [1], [0, 0, 1, 1], [], []>} : vector<32x4xf32>, vector<4x128xf32>, vector<32x128xf32> -> vector<32x128xf32>
    %61 = arith.addf %60, %9 : vector<32x128xf32>
    %cst_29 = arith.constant 0.000000e+00 : f32
    %62 = vector.broadcast %cst_29 : f32 to vector<32x128xf32>
    %63 = arith.maximumf %61, %62 : vector<32x128xf32>
    %cst_30 = arith.constant dense<0.000000e+00> : vector<32x128xf32>
    %64 = tpu.matmul %11, %63, %cst_30 {dimension_numbers = #tpu.dot_dimension_numbers<[1], [0], [0], [1], [0, 0, 1, 1], [], []>} : vector<32x32xf32>, vector<32x128xf32>, vector<32x128xf32> -> vector<32x128xf32>
    %65 = vector.broadcast %12 : vector<32x1xf32> to vector<32x128xf32>
    %66 = arith.addf %64, %65 : vector<32x128xf32>
    %cst_31 = arith.constant 0.000000e+00 : f32
    %67 = vector.broadcast %cst_31 : f32 to vector<32x128xf32>
    %68 = arith.maximumf %66, %67 : vector<32x128xf32>
    %69 = vector.broadcast %13 : vector<32x1xf32> to vector<32x128xf32>
    %70 = arith.mulf %68, %69 : vector<32x128xf32>
    %cst_32 = arith.constant dense<0.000000e+00> : vector<128xf32>
    %71 = vector.multi_reduction <add>, %70, %cst_32 [0] : vector<32x128xf32> to vector<128xf32>
    %72 = vector.shape_cast %71 : vector<128xf32> to vector<1x128xf32>
    %73 = vector.broadcast %14 : vector<1x1xf32> to vector<1x128xf32>
    %74 = arith.addf %72, %73 : vector<1x128xf32>
    %75 = vector.extract_strided_slice %3 {offsets = [0, 1], sizes = [4, 128], strides = [1, 1]} : vector<4x256xf32> to vector<4x128xf32>
    %cst_33 = arith.constant dense<0.000000e+00> : vector<32x128xf32>
    %76 = tpu.matmul %10, %75, %cst_33 {dimension_numbers = #tpu.dot_dimension_numbers<[1], [0], [0], [1], [0, 0, 1, 1], [], []>} : vector<32x4xf32>, vector<4x128xf32>, vector<32x128xf32> -> vector<32x128xf32>
    %77 = arith.addf %76, %9 : vector<32x128xf32>
    %cst_34 = arith.constant 0.000000e+00 : f32
    %78 = vector.broadcast %cst_34 : f32 to vector<32x128xf32>
    %79 = arith.maximumf %77, %78 : vector<32x128xf32>
    %cst_35 = arith.constant dense<0.000000e+00> : vector<32x128xf32>
    %80 = tpu.matmul %11, %79, %cst_35 {dimension_numbers = #tpu.dot_dimension_numbers<[1], [0], [0], [1], [0, 0, 1, 1], [], []>} : vector<32x32xf32>, vector<32x128xf32>, vector<32x128xf32> -> vector<32x128xf32>
    %81 = vector.broadcast %12 : vector<32x1xf32> to vector<32x128xf32>
    %82 = arith.addf %80, %81 : vector<32x128xf32>
    %cst_36 = arith.constant 0.000000e+00 : f32
    %83 = vector.broadcast %cst_36 : f32 to vector<32x128xf32>
    %84 = arith.maximumf %82, %83 : vector<32x128xf32>
    %85 = vector.broadcast %13 : vector<32x1xf32> to vector<32x128xf32>
    %86 = arith.mulf %84, %85 : vector<32x128xf32>
    %cst_37 = arith.constant dense<0.000000e+00> : vector<128xf32>
    %87 = vector.multi_reduction <add>, %86, %cst_37 [0] : vector<32x128xf32> to vector<128xf32>
    %88 = vector.shape_cast %87 : vector<128xf32> to vector<1x128xf32>
    %89 = vector.broadcast %14 : vector<1x1xf32> to vector<1x128xf32>
    %90 = arith.addf %88, %89 : vector<1x128xf32>
    %91 = arith.maximumf %74, %90 : vector<1x128xf32>
    %cst_38 = arith.constant 0.000000e+00 : f32
    %92 = vector.broadcast %cst_38 : f32 to vector<1x128xf32>
    %93 = arith.subf %74, %91 : vector<1x128xf32>
    %94 = math.exp %93 : vector<1x128xf32>
    %95 = arith.addf %92, %94 : vector<1x128xf32>
    %96 = arith.subf %90, %91 : vector<1x128xf32>
    %97 = math.exp %96 : vector<1x128xf32>
    %98 = arith.addf %95, %97 : vector<1x128xf32>
    %99 = math.log %98 : vector<1x128xf32>
    %100 = arith.addf %91, %99 : vector<1x128xf32>
    %cst_39 = arith.constant -0.693147182 : f32
    %101 = vector.broadcast %cst_39 : f32 to vector<1x128xf32>
    %102 = arith.addf %100, %101 : vector<1x128xf32>
    %cst_40 = arith.constant 0.000000e+00 : f32
    %103 = vector.broadcast %cst_40 : f32 to vector<1x128xf32>
    %104 = arith.subf %103, %58 : vector<1x128xf32>
    %cst_41 = arith.constant 0.000000e+00 : f32
    %105 = vector.broadcast %cst_41 : f32 to vector<1x128xf32>
    %106 = arith.maximumf %104, %105 : vector<1x128xf32>
    %107 = math.absf %104 : vector<1x128xf32>
    %cst_42 = arith.constant 0.000000e+00 : f32
    %108 = vector.broadcast %cst_42 : f32 to vector<1x128xf32>
    %109 = arith.subf %108, %107 : vector<1x128xf32>
    %110 = math.exp %109 : vector<1x128xf32>
    %111 = math.log1p %110 : vector<1x128xf32>
    %112 = arith.addf %106, %111 : vector<1x128xf32>
    %cst_43 = arith.constant 0.000000e+00 : f32
    %113 = vector.broadcast %cst_43 : f32 to vector<1x128xf32>
    %114 = arith.maximumf %102, %113 : vector<1x128xf32>
    %115 = math.absf %102 : vector<1x128xf32>
    %cst_44 = arith.constant 0.000000e+00 : f32
    %116 = vector.broadcast %cst_44 : f32 to vector<1x128xf32>
    %117 = arith.subf %116, %115 : vector<1x128xf32>
    %118 = math.exp %117 : vector<1x128xf32>
    %119 = math.log1p %118 : vector<1x128xf32>
    %120 = arith.addf %114, %119 : vector<1x128xf32>
    %121 = tpu.iota {dimensions = array<i32: 1>} : vector<1x128xi32>
    %c128_i32_45 = arith.constant 128 : i32
    %122 = arith.muli %arg0, %c128_i32_45 : i32
    %123 = vector.broadcast %122 : i32 to vector<1x128xi32>
    %124 = arith.addi %121, %123 : vector<1x128xi32>
    %c8_i32 = arith.constant 8 : i32
    %125 = vector.broadcast %c8_i32 : i32 to vector<1x128xi32>
    %126 = arith.cmpi slt, %124, %125 : vector<1x128xi32>
    %127 = arith.extui %126 : vector<1x128xi1> to vector<1x128xi32>
    %128 = arith.sitofp %127 : vector<1x128xi32> to vector<1x128xf32>
    %129 = arith.mulf %112, %128 : vector<1x128xf32>
    %130 = arith.mulf %120, %128 : vector<1x128xf32>
    %cst_46 = arith.constant 0.000000e+00 : f32
    %131 = vector.broadcast %cst_46 : f32 to vector<1x128xf32>
    %132 = arith.subf %131, %112 : vector<1x128xf32>
    %133 = math.exp %132 : vector<1x128xf32>
    %cst_47 = arith.constant 0.000000e+00 : f32
    %134 = vector.broadcast %cst_47 : f32 to vector<1x128xf32>
    %135 = arith.subf %134, %120 : vector<1x128xf32>
    %136 = math.exp %135 : vector<1x128xf32>
    %137 = arith.subf %133, %136 : vector<1x128xf32>
    %138 = arith.mulf %137, %128 : vector<1x128xf32>
    %cst_48 = arith.constant 0.000000e+00 : f32
    %139 = vector.broadcast %cst_48 : f32 to vector<5x128xf32>
    %140 = tpu.concatenate %129, %130, %138, %139 in 0 : vector<1x128xf32>, vector<1x128xf32>, vector<1x128xf32>, vector<5x128xf32> -> vector<8x128xf32>
    %cst_49 = arith.constant dense<0.000000e+00> : vector<8xf32>
    %141 = vector.multi_reduction <add>, %140, %cst_49 [1] : vector<8x128xf32> to vector<8xf32>
    %142 = vector.shape_cast %141 : vector<8xf32> to vector<8x1xf32>
    %143 = tpu.iota {dimensions = array<i32: 1>} : vector<8x128xi32>
    %c0_i32 = arith.constant 0 : i32
    %144 = vector.broadcast %c0_i32 : i32 to vector<8x128xi32>
    %145 = arith.cmpi eq, %143, %144 : vector<8x128xi32>
    %cst_50 = arith.constant 0.000000e+00 : f32
    %146 = vector.shape_cast %142 : vector<8x1xf32> to vector<8x1xf32>
    %147 = vector.broadcast %146 : vector<8x1xf32> to vector<8x128xf32>
    %148 = vector.broadcast %cst_50 : f32 to vector<8x128xf32>
    %149 = arith.select %145, %147, %148 : vector<8x128xi1>, vector<8x128xf32>
    %c0_51 = arith.constant 0 : index
    %c0_52 = arith.constant 0 : index
    %150 = vector.load %arg10[%c0_51, %c0_52] : memref<8x128xf32, #tpu.memory_space<vmem>>, vector<8x128xf32>
    tpu.vector_store %arg10[%c0_51, %c0_52], %149 {strides = array<i32>} : memref<8x128xf32, #tpu.memory_space<vmem>>, vector<8x128xf32>,
    return
  }
  func.func @transform_0(%arg0: i32) -> (i32, i32) {
    %c0_i32 = arith.constant 0 : i32
    %c0_i32_0 = arith.constant 0 : i32
    %c0_i32_1 = arith.constant 0 : i32
    return %c0_i32, %c0_i32_0 : i32, i32
  }
  func.func @transform_1(%arg0: i32) -> (i32, i32) {
    %c0_i32 = arith.constant 0 : i32
    %c0_i32_0 = arith.constant 0 : i32
    return %c0_i32, %arg0 : i32, i32
  }
  func.func @transform_2(%arg0: i32) -> (i32, i32) {
    %c0_i32 = arith.constant 0 : i32
    %c0_i32_0 = arith.constant 0 : i32
    %c0_i32_1 = arith.constant 0 : i32
    return %c0_i32, %c0_i32_0 : i32, i32
  }
  func.func @transform_3(%arg0: i32) -> (i32, i32) {
    %c0_i32 = arith.constant 0 : i32
    %c0_i32_0 = arith.constant 0 : i32
    %c0_i32_1 = arith.constant 0 : i32
    return %c0_i32, %c0_i32_0 : i32, i32
  }
  func.func @transform_4(%arg0: i32) -> (i32, i32) {
    %c0_i32 = arith.constant 0 : i32
    %c0_i32_0 = arith.constant 0 : i32
    %c0_i32_1 = arith.constant 0 : i32
    return %c0_i32, %c0_i32_0 : i32, i32
  }
  func.func @transform_5(%arg0: i32) -> (i32, i32) {
    %c0_i32 = arith.constant 0 : i32
    %c0_i32_0 = arith.constant 0 : i32
    %c0_i32_1 = arith.constant 0 : i32
    return %c0_i32, %c0_i32_0 : i32, i32
  }
  func.func @transform_6(%arg0: i32) -> (i32, i32) {
    %c0_i32 = arith.constant 0 : i32
    %c0_i32_0 = arith.constant 0 : i32
    %c0_i32_1 = arith.constant 0 : i32
    return %c0_i32, %c0_i32_0 : i32, i32
  }
  func.func @transform_7(%arg0: i32) -> (i32, i32) {
    %c0_i32 = arith.constant 0 : i32
    %c0_i32_0 = arith.constant 0 : i32
    %c0_i32_1 = arith.constant 0 : i32
    return %c0_i32, %c0_i32_0 : i32, i32
  }
  func.func @transform_8(%arg0: i32) -> (i32, i32) {
    %c0_i32 = arith.constant 0 : i32
    %c0_i32_0 = arith.constant 0 : i32
    %c0_i32_1 = arith.constant 0 : i32
    return %c0_i32, %c0_i32_0 : i32, i32
  }
  func.func @transform_9(%arg0: i32) -> (i32, i32) {
    %c0_i32 = arith.constant 0 : i32
    %c0_i32_0 = arith.constant 0 : i32
    return %arg0, %c0_i32 : i32, i32
  }
}

</mosaic_0001>

<llo_original>
// kernel: tpu_custom_call.1
$region0: #{tpu_custom_call.1}
  #allocation0 [shape = 'u32[]', space=smem, size = 0x4, offset = 0x4, fixed_abs, tag = 'smem constant byte address 0x4 - core index']
  #allocation1 [shape = 'u32[72,128]{1,0:T(1,128)}', space=vmem, size = 0x9000, scoped, tag = 'internal scratch']
  #allocation2 [shape = 'f32[1,1]{1,0:T(1,128)S(1)}', space=vmem, size = 0x200, scoped, tag = 'scoped memory for tpu_custom_call.1']
  %s0 = inlined_call_operand.vmem [shape: f32[4,256], index: 0, kind: input, shape index: {}]
  %s1 = inlined_call_operand.vmem [shape: f32[8,128], index: 1, kind: input, shape index: {}]
  %s2 = inlined_call_operand.vmem [shape: f32[32,4], index: 2, kind: input, shape index: {}]
  %s3 = inlined_call_operand.vmem [shape: f32[32,8], index: 3, kind: input, shape index: {}]
  %s4 = inlined_call_operand.vmem [shape: f32[32,1], index: 4, kind: input, shape index: {}]
  %s5 = inlined_call_operand.vmem [shape: f32[32,32], index: 5, kind: input, shape index: {}]
  %s6 = inlined_call_operand.vmem [shape: f32[32,1], index: 6, kind: input, shape index: {}]
  %s7 = inlined_call_operand.vmem [shape: f32[32,1], index: 7, kind: input, shape index: {}]
  %s8 = inlined_call_operand.<no memory space> [shape: f32[1,1], index: 8, kind: input, shape index: {}]
  %s9 = inlined_call_operand.hbm [shape: f32[8,128], index: 9, kind: output, shape index: {}]
  %s10 = sld [smem:[#allocation0]]
  $region46: #{tpu_custom_call.1} parent=0
    _
  %s12 = ssub.s32 1, %s10
  %s13 = scalar_select 0, %s12, %s10
  %v14 = vstv %s8
  %15 = vst [vmem:[#allocation2] sm:$0x1] %v14
  $region1: #{tpu_custom_call.1} parent=0
    #allocation3 [shape = 'u8[4096]{0}', space=vmem, size = 0x1000, scoped, tag = 'output window, operand 0, single buffered']
    #allocation4 [shape = 's32[1]{0}', space=sflag, size = 0x4, scoped, tag = 'scoped memory for tpu_custom_call.1']
    %16 = vsyncpa [#allocation4], 0
    // Predicated region
    $region2: #{tpu_custom_call.1} parent=1 // pred_check
      _
    $region3: #{tpu_custom_call.1} parent=1 // pred_check_branch
      %18 = sbr.rel (0) target = $region5
    $region4: #{tpu_custom_call.1} parent=1 // pred_region
      _
    $region5: #{tpu_custom_call.1} parent=1 // pred_fallthru
      _
    // Predicated region
    $region6: #{tpu_custom_call.1} parent=1 // pred_check
      _
    $region7: #{tpu_custom_call.1} parent=1 // pred_check_branch
      %20 = sbr.rel (0) target = $region9
    $region8: #{tpu_custom_call.1} parent=1 // pred_region
      _
    $region9: #{tpu_custom_call.1} parent=1 // pred_fallthru
      _
    // Predicated region
    $region10: #{tpu_custom_call.1} parent=1 // pred_check
      _
    $region11: #{tpu_custom_call.1} parent=1 // pred_check_branch
      %22 = sbr.rel (0) target = $region13
    $region12: #{tpu_custom_call.1} parent=1 // pred_region
      _
    $region13: #{tpu_custom_call.1} parent=1 // pred_fallthru
      _
    // Predicated region
    $region14: #{tpu_custom_call.1} parent=1 // pred_check
      _
    $region15: #{tpu_custom_call.1} parent=1 // pred_check_branch
      %24 = sbr.rel (0) target = $region17
    $region16: #{tpu_custom_call.1} parent=1 // pred_region
      _
    $region17: #{tpu_custom_call.1} parent=1 // pred_fallthru
      _
    // Predicated region
    $region18: #{tpu_custom_call.1} parent=1 // pred_check
      _
    $region19: #{tpu_custom_call.1} parent=1 // pred_check_branch
      %26 = sbr.rel (0) target = $region21
    $region20: #{tpu_custom_call.1} parent=1 // pred_region
      _
    $region21: #{tpu_custom_call.1} parent=1 // pred_fallthru
      _
    // Predicated region
    $region22: #{tpu_custom_call.1} parent=1 // pred_check
      _
    $region23: #{tpu_custom_call.1} parent=1 // pred_check_branch
      %28 = sbr.rel (0) target = $region25
    $region24: #{tpu_custom_call.1} parent=1 // pred_region
      _
    $region25: #{tpu_custom_call.1} parent=1 // pred_fallthru
      _
    // Predicated region
    $region26: #{tpu_custom_call.1} parent=1 // pred_check
      _
    $region27: #{tpu_custom_call.1} parent=1 // pred_check_branch
      %30 = sbr.rel (0) target = $region29
    $region28: #{tpu_custom_call.1} parent=1 // pred_region
      _
    $region29: #{tpu_custom_call.1} parent=1 // pred_fallthru
      _
    // Predicated region
    $region30: #{tpu_custom_call.1} parent=1 // pred_check
      _
    $region31: #{tpu_custom_call.1} parent=1 // pred_check_branch
      %32 = sbr.rel (0) target = $region33
    $region32: #{tpu_custom_call.1} parent=1 // pred_region
      _
    $region33: #{tpu_custom_call.1} parent=1 // pred_fallthru
      _
    // Predicated region
    $region34: #{tpu_custom_call.1} parent=1 // pred_check
      _
    $region35: #{tpu_custom_call.1} parent=1 // pred_check_branch
      %34 = sbr.rel (0) target = $region37
    $region36: #{tpu_custom_call.1} parent=1 // pred_region
      _
    $region37: #{tpu_custom_call.1} parent=1 // pred_fallthru
      _
    %s35 = smul.u32 0, 128
    %s36 = sshra.s32 %s35, 7
    %s37 = sand.u32 %s35, 127
    %s38 = smul.addr %s36, 4
    %s39 = scalar_lea.vmem %s0, %s38
    %v40 = vld [vmem:[%s39] sm:$0xff]
    %v41 = vld [vmem:[%s3] sm:$0xff]
    %v42 = vld [vmem:[%s3 + $0x8] sm:$0xff]
    %v43 = vld [vmem:[%s3 + $0x10] sm:$0xff]
    %v44 = vld [vmem:[%s3 + $0x18] sm:$0xff]
    %v45 = vld [vmem:[%s1] sm:$0xff]
    %v46 = vld [vmem:[%s4] sm:$0xff]
    %v47 = vld [vmem:[%s4 + $0x8] sm:$0xff]
    %v48 = vld [vmem:[%s4 + $0x10] sm:$0xff]
    %v49 = vld [vmem:[%s4 + $0x18] sm:$0xff]
    %51 = vset.pattern.permute.xlu0 0
    %52 = vperm.xlu0 %51, %v46
    %v53 = vpop.permute.xlu0 %52
    %56 = vset.pattern.permute.xlu0 0
    %57 = vperm.xlu0 %56, %v47
    %v58 = vpop.permute.xlu0 %57
    %61 = vset.pattern.permute.xlu0 0
    %62 = vperm.xlu0 %61, %v48
    %v63 = vpop.permute.xlu0 %62
    %66 = vset.pattern.permute.xlu0 0
    %67 = vperm.xlu0 %66, %v49
    %v68 = vpop.permute.xlu0 %67
    %vm70 = vcmask 64512
    %v72 = vsel %vm70, %v41, 0
    %v75 = vsel %vm70, %v42, 0
    %v78 = vsel %vm70, %v43, 0
    %v81 = vsel %vm70, %v44, 0
    %83 = vmatpush.msra.mxu0 0.0
    %84 = vmatpush.msra.mxu0 0.0
    %85 = vmatpush.msra.mxu0 0.0
    %86 = vmatpush.msra.mxu0 0.0
    %87 = vmatpush.msra.mxu0 0.0
    %88 = vmatpush.msra.mxu0 0.0
    %89 = vmatpush.msra.mxu0 0.0
    %90 = vmatpush.msra.mxu0 0.0
    %91 = vmatpush.msra.mxu0 0.0
    %92 = vmatpush.msra.mxu0 0.0
    %93 = vmatpush.msra.mxu0 0.0
    %94 = vmatpush.msra.mxu0 0.0
    %95 = vmatpush.msra.mxu0 0.0
    %96 = vmatpush.msra.mxu0 0.0
    %97 = vmatpush.msra.mxu0 0.0
    %98 = vmatpush.msra.mxu0 %v45
    %99 = vmatmul.f32.gmra.mxu0 %v72
    %v100 = vpop.f32.mrf.mxu0
    %v101 = vadd.f32 %v53, %v100
    %102 = vmatmul.f32.gmra.mxu0 %v75
    %v103 = vpop.f32.mrf.mxu0
    %v104 = vadd.f32 %v58, %v103
    %105 = vmatmul.f32.gmra.mxu0 %v78
    %v106 = vpop.f32.mrf.mxu0
    %v107 = vadd.f32 %v63, %v106
    %108 = vmatmul.f32.gmra.mxu0 %v81
    %v109 = vpop.f32.mrf.mxu0
    %v110 = vadd.f32 %v68, %v109
    %111 = vdwg.mxu0
    %v112 = vld [vmem:[%s2] sm:$0xff]
    %v113 = vld [vmem:[%s2 + $0x8] sm:$0xff]
    %v114 = vld [vmem:[%s2 + $0x10] sm:$0xff]
    %v115 = vld [vmem:[%s2 + $0x18] sm:$0xff]
    %v116 = vld [vmem:[%s5] sm:$0xff]
    %v117 = vld [vmem:[%s5 + $0x8] sm:$0xff]
    %v118 = vld [vmem:[%s5 + $0x10] sm:$0xff]
    %v119 = vld [vmem:[%s5 + $0x18] sm:$0xff]
    %v120 = vld [vmem:[%s6] sm:$0xff]
    %v121 = vld [vmem:[%s6 + $0x8] sm:$0xff]
    %v122 = vld [vmem:[%s6 + $0x10] sm:$0xff]
    %v123 = vld [vmem:[%s6 + $0x18] sm:$0xff]
    %v124 = vld [vmem:[%s7] sm:$0xff]
    %v125 = vld [vmem:[%s7 + $0x8] sm:$0xff]
    %v126 = vld [vmem:[%s7 + $0x10] sm:$0xff]
    %v127 = vld [vmem:[%s7 + $0x18] sm:$0xff]
    %v128 = vld [vmem:[#allocation2] sm:$0x1]
    %130 = vst [vmem:[#allocation1] ss:$2 sm:$0xff] %v40
    %v131 = vld.sshfl [vmem:[#allocation1] sm:$0xff pattern:$0x75316420]
    %v132 = vld.sshfl [vmem:[#allocation1 + $0x8] sm:$0xff pattern:$0x75316420]
    %133 = vrot.lane.b32.xlu0 %v131, 126
    %v134 = vpop.permute.xlu0 %133
    %135 = vrot.lane.b32.xlu0 %v132, 126
    %v136 = vpop.permute.xlu0 %135
    %vm137 = vcmask 1031168
    %v138 = vsel %vm137, %v134, %v136
    %vm139 = vcmask 31744
    %v141 = vsel %vm139, %v112, 0
    %v144 = vsel %vm139, %v113, 0
    %v147 = vsel %vm139, %v114, 0
    %v150 = vsel %vm139, %v115, 0
    %vm152 = vcmask 1043456
    %v153 = vsel %vm152, %v138, 0
    %155 = vmatpush.msra.mxu0 0.0
    %156 = vmatpush.msra.mxu0 0.0
    %157 = vmatpush.msra.mxu0 0.0
    %158 = vmatpush.msra.mxu0 0.0
    %159 = vmatpush.msra.mxu0 0.0
    %160 = vmatpush.msra.mxu0 0.0
    %161 = vmatpush.msra.mxu0 0.0
    %162 = vmatpush.msra.mxu0 0.0
    %163 = vmatpush.msra.mxu0 0.0
    %164 = vmatpush.msra.mxu0 0.0
    %165 = vmatpush.msra.mxu0 0.0
    %166 = vmatpush.msra.mxu0 0.0
    %167 = vmatpush.msra.mxu0 0.0
    %168 = vmatpush.msra.mxu0 0.0
    %169 = vmatpush.msra.mxu0 0.0
    %170 = vmatpush.msra.mxu0 %v153
    %171 = vmatmul.f32.gmra.mxu0 %v141
    %v172 = vpop.f32.mrf.mxu0
    %v173 = vadd.f32 %v101, %v172
    %174 = vmatmul.f32.gmra.mxu0 %v144
    %v175 = vpop.f32.mrf.mxu0
    %v176 = vadd.f32 %v104, %v175
    %177 = vmatmul.f32.gmra.mxu0 %v147
    %v178 = vpop.f32.mrf.mxu0
    %v179 = vadd.f32 %v107, %v178
    %180 = vmatmul.f32.gmra.mxu0 %v150
    %v181 = vpop.f32.mrf.mxu0
    %v182 = vadd.f32 %v110, %v181
    %183 = vdwg.mxu0
    %v184 = vmax.f32 %v173, 0.0
    %v185 = vmax.f32 %v176, 0.0
    %v186 = vmax.f32 %v179, 0.0
    %v187 = vmax.f32 %v182, 0.0
    %189 = vset.pattern.permute.xlu0 0
    %190 = vperm.xlu0 %189, %v120
    %v191 = vpop.permute.xlu0 %190
    %194 = vset.pattern.permute.xlu0 0
    %195 = vperm.xlu0 %194, %v121
    %v196 = vpop.permute.xlu0 %195
    %199 = vset.pattern.permute.xlu0 0
    %200 = vperm.xlu0 %199, %v122
    %v201 = vpop.permute.xlu0 %200
    %204 = vset.pattern.permute.xlu0 0
    %205 = vperm.xlu0 %204, %v123
    %v206 = vpop.permute.xlu0 %205
    %vm208 = vcmask 261120
    %v210 = vsel %vm208, %v116, 0
    %v213 = vsel %vm208, %v117, 0
    %v216 = vsel %vm208, %v118, 0
    %v219 = vsel %vm208, %v119, 0
    %221 = vmatpush.msra.mxu0 0.0
    %222 = vmatpush.msra.mxu0 0.0
    %223 = vmatpush.msra.mxu0 0.0
    %224 = vmatpush.msra.mxu0 0.0
    %225 = vmatpush.msra.mxu0 0.0
    %226 = vmatpush.msra.mxu0 0.0
    %227 = vmatpush.msra.mxu0 0.0
    %228 = vmatpush.msra.mxu0 0.0
    %229 = vmatpush.msra.mxu0 0.0
    %230 = vmatpush.msra.mxu0 0.0
    %231 = vmatpush.msra.mxu0 0.0
    %232 = vmatpush.msra.mxu0 0.0
    %233 = vmatpush.msra.mxu0 %v187
    %234 = vmatpush.msra.mxu0 %v186
    %235 = vmatpush.msra.mxu0 %v185
    %236 = vmatpush.msra.mxu0 %v184
    %237 = vmatmul.f32.gmra.mxu0 %v210
    %v238 = vpop.f32.mrf.mxu0
    %v239 = vadd.f32 %v191, %v238
    %240 = vmatmul.f32.gmra.mxu0 %v213
    %v241 = vpop.f32.mrf.mxu0
    %v242 = vadd.f32 %v196, %v241
    %243 = vmatmul.f32.gmra.mxu0 %v216
    %v244 = vpop.f32.mrf.mxu0
    %v245 = vadd.f32 %v201, %v244
    %246 = vmatmul.f32.gmra.mxu0 %v219
    %v247 = vpop.f32.mrf.mxu0
    %v248 = vadd.f32 %v206, %v247
    %249 = vdwg.mxu0
    %v250 = vmax.f32 %v239, 0.0
    %v251 = vmax.f32 %v242, 0.0
    %v252 = vmax.f32 %v245, 0.0
    %v253 = vmax.f32 %v248, 0.0
    %255 = vset.pattern.permute.xlu0 0
    %256 = vperm.xlu0 %255, %v124
    %v257 = vpop.permute.xlu0 %256
    %260 = vset.pattern.permute.xlu0 0
    %261 = vperm.xlu0 %260, %v125
    %v262 = vpop.permute.xlu0 %261
    %265 = vset.pattern.permute.xlu0 0
    %266 = vperm.xlu0 %265, %v126
    %v267 = vpop.permute.xlu0 %266
    %270 = vset.pattern.permute.xlu0 0
    %271 = vperm.xlu0 %270, %v127
    %v272 = vpop.permute.xlu0 %271
    %v274 = vmul.f32 %v250, %v257
    %v275 = vmul.f32 %v251, %v262
    %v276 = vmul.f32 %v252, %v267
    %v277 = vmul.f32 %v253, %v272
    %v278 = vadd.f32 %v274, %v275
    %v279 = vadd.f32 %v278, %v276
    %v280 = vadd.f32 %v279, %v277
    %v281 = vrot.slane %v280, 4
    %v282 = vadd.f32 %v280, %v281
    %v283 = vrot.slane %v282, 2
    %v284 = vadd.f32 %v282, %v283
    %v285 = vrot.slane %v284, 1
    %v286 = vadd.f32 %v284, %v285
    %288 = vset.pattern.permute.xlu0 0
    %289 = vperm.xlu0 %288, %v128
    %v290 = vpop.permute.xlu0 %289
    %v292 = vperm.slane %v290, 0
    %v293 = vadd.f32 %v286, %v292
    %294 = vst [vmem:[#allocation1] ss:$2 sm:$0xff] %v40
    %v295 = vld.sshfl [vmem:[#allocation1] sm:$0xff pattern:$0x75316420]
    %v296 = vld.sshfl [vmem:[#allocation1 + $0x8] sm:$0xff pattern:$0x75316420]
    %297 = vrot.lane.b32.xlu0 %v295, 125
    %v298 = vpop.permute.xlu0 %297
    %299 = vrot.lane.b32.xlu0 %v296, 125
    %v300 = vpop.permute.xlu0 %299
    %vm301 = vcmask 1022976
    %v302 = vsel %vm301, %v298, %v300
    %v303 = vsel %vm152, %v302, 0
    %305 = vmatpush.msra.mxu0 0.0
    %306 = vmatpush.msra.mxu0 0.0
    %307 = vmatpush.msra.mxu0 0.0
    %308 = vmatpush.msra.mxu0 0.0
    %309 = vmatpush.msra.mxu0 0.0
    %310 = vmatpush.msra.mxu0 0.0
    %311 = vmatpush.msra.mxu0 0.0
    %312 = vmatpush.msra.mxu0 0.0
    %313 = vmatpush.msra.mxu0 0.0
    %314 = vmatpush.msra.mxu0 0.0
    %315 = vmatpush.msra.mxu0 0.0
    %316 = vmatpush.msra.mxu0 0.0
    %317 = vmatpush.msra.mxu0 0.0
    %318 = vmatpush.msra.mxu0 0.0
    %319 = vmatpush.msra.mxu0 0.0
    %320 = vmatpush.msra.mxu0 %v303
    %321 = vmatmul.f32.gmra.mxu0 %v141
    %v322 = vpop.f32.mrf.mxu0
    %v323 = vadd.f32 %v101, %v322
    %324 = vmatmul.f32.gmra.mxu0 %v144
    %v325 = vpop.f32.mrf.mxu0
    %v326 = vadd.f32 %v104, %v325
    %327 = vmatmul.f32.gmra.mxu0 %v147
    %v328 = vpop.f32.mrf.mxu0
    %v329 = vadd.f32 %v107, %v328
    %330 = vmatmul.f32.gmra.mxu0 %v150
    %v331 = vpop.f32.mrf.mxu0
    %v332 = vadd.f32 %v110, %v331
    %333 = vdwg.mxu0
    %v334 = vmax.f32 %v323, 0.0
    %v335 = vmax.f32 %v326, 0.0
    %v336 = vmax.f32 %v329, 0.0
    %v337 = vmax.f32 %v332, 0.0
    %338 = vmatpush.msra.mxu0 0.0
    %339 = vmatpush.msra.mxu0 0.0
    %340 = vmatpush.msra.mxu0 0.0
    %341 = vmatpush.msra.mxu0 0.0
    %342 = vmatpush.msra.mxu0 0.0
    %343 = vmatpush.msra.mxu0 0.0
    %344 = vmatpush.msra.mxu0 0.0
    %345 = vmatpush.msra.mxu0 0.0
    %346 = vmatpush.msra.mxu0 0.0
    %347 = vmatpush.msra.mxu0 0.0
    %348 = vmatpush.msra.mxu0 0.0
    %349 = vmatpush.msra.mxu0 0.0
    %350 = vmatpush.msra.mxu0 %v337
    %351 = vmatpush.msra.mxu0 %v336
    %352 = vmatpush.msra.mxu0 %v335
    %353 = vmatpush.msra.mxu0 %v334
    %354 = vmatmul.f32.gmra.mxu0 %v210
    %v355 = vpop.f32.mrf.mxu0
    %v356 = vadd.f32 %v191, %v355
    %357 = vmatmul.f32.gmra.mxu0 %v213
    %v358 = vpop.f32.mrf.mxu0
    %v359 = vadd.f32 %v196, %v358
    %360 = vmatmul.f32.gmra.mxu0 %v216
    %v361 = vpop.f32.mrf.mxu0
    %v362 = vadd.f32 %v201, %v361
    %363 = vmatmul.f32.gmra.mxu0 %v219
    %v364 = vpop.f32.mrf.mxu0
    %v365 = vadd.f32 %v206, %v364
    %366 = vdwg.mxu0
    %v367 = vmax.f32 %v356, 0.0
    %v368 = vmax.f32 %v359, 0.0
    %v369 = vmax.f32 %v362, 0.0
    %v370 = vmax.f32 %v365, 0.0
    %v371 = vmul.f32 %v367, %v257
    %v372 = vmul.f32 %v368, %v262
    %v373 = vmul.f32 %v369, %v267
    %v374 = vmul.f32 %v370, %v272
    %v375 = vadd.f32 %v371, %v372
    %v376 = vadd.f32 %v375, %v373
    %v377 = vadd.f32 %v376, %v374
    %v378 = vrot.slane %v377, 4
    %v379 = vadd.f32 %v377, %v378
    %v380 = vrot.slane %v379, 2
    %v381 = vadd.f32 %v379, %v380
    %v382 = vrot.slane %v381, 1
    %v383 = vadd.f32 %v381, %v382
    %v384 = vadd.f32 %v383, %v292
    %v385 = vmax.f32 %v293, %v384
    %v386 = vsub.f32 %v293, %v385
    %v387 = vmul.f32 %v386, 1.442695
    %v388 = vpow.pop %v387
    %v389 = vadd.f32 %v388, 0.0
    %v390 = vsub.f32 %v384, %v385
    %v391 = vmul.f32 %v390, 1.442695
    %v392 = vpow.pop %v391
    %v393 = vadd.f32 %v389, %v392
    %v394 = vlog2.pop %v393
    %v395 = vmul.f32 %v394, 0.6931472
    %v396 = vadd.f32 %v385, %v395
    %v397 = vadd.f32 %v396, -0.6931472
    %v398 = vsel %vm152, %v40, 0
    %400 = vmatpush.msra.mxu0 0.0
    %401 = vmatpush.msra.mxu0 0.0
    %402 = vmatpush.msra.mxu0 0.0
    %403 = vmatpush.msra.mxu0 0.0
    %404 = vmatpush.msra.mxu0 0.0
    %405 = vmatpush.msra.mxu0 0.0
    %406 = vmatpush.msra.mxu0 0.0
    %407 = vmatpush.msra.mxu0 0.0
    %408 = vmatpush.msra.mxu0 0.0
    %409 = vmatpush.msra.mxu0 0.0
    %410 = vmatpush.msra.mxu0 0.0
    %411 = vmatpush.msra.mxu0 0.0
    %412 = vmatpush.msra.mxu0 0.0
    %413 = vmatpush.msra.mxu0 0.0
    %414 = vmatpush.msra.mxu0 0.0
    %415 = vmatpush.msra.mxu0 %v398
    %416 = vmatmul.f32.gmra.mxu0 %v141
    %v417 = vpop.f32.mrf.mxu0
    %v418 = vadd.f32 %v101, %v417
    %419 = vmatmul.f32.gmra.mxu0 %v144
    %v420 = vpop.f32.mrf.mxu0
    %v421 = vadd.f32 %v104, %v420
    %422 = vmatmul.f32.gmra.mxu0 %v147
    %v423 = vpop.f32.mrf.mxu0
    %v424 = vadd.f32 %v107, %v423
    %425 = vmatmul.f32.gmra.mxu0 %v150
    %v426 = vpop.f32.mrf.mxu0
    %v427 = vadd.f32 %v110, %v426
    %428 = vdwg.mxu0
    %v429 = vmax.f32 %v418, 0.0
    %v430 = vmax.f32 %v421, 0.0
    %v431 = vmax.f32 %v424, 0.0
    %v432 = vmax.f32 %v427, 0.0
    %433 = vmatpush.msra.mxu0 0.0
    %434 = vmatpush.msra.mxu0 0.0
    %435 = vmatpush.msra.mxu0 0.0
    %436 = vmatpush.msra.mxu0 0.0
    %437 = vmatpush.msra.mxu0 0.0
    %438 = vmatpush.msra.mxu0 0.0
    %439 = vmatpush.msra.mxu0 0.0
    %440 = vmatpush.msra.mxu0 0.0
    %441 = vmatpush.msra.mxu0 0.0
    %442 = vmatpush.msra.mxu0 0.0
    %443 = vmatpush.msra.mxu0 0.0
    %444 = vmatpush.msra.mxu0 0.0
    %445 = vmatpush.msra.mxu0 %v432
    %446 = vmatpush.msra.mxu0 %v431
    %447 = vmatpush.msra.mxu0 %v430
    %448 = vmatpush.msra.mxu0 %v429
    %449 = vmatmul.f32.gmra.mxu0 %v210
    %v450 = vpop.f32.mrf.mxu0
    %v451 = vadd.f32 %v191, %v450
    %452 = vmatmul.f32.gmra.mxu0 %v213
    %v453 = vpop.f32.mrf.mxu0
    %v454 = vadd.f32 %v196, %v453
    %455 = vmatmul.f32.gmra.mxu0 %v216
    %v456 = vpop.f32.mrf.mxu0
    %v457 = vadd.f32 %v201, %v456
    %458 = vmatmul.f32.gmra.mxu0 %v219
    %v459 = vpop.f32.mrf.mxu0
    %v460 = vadd.f32 %v206, %v459
    %461 = vdwg.mxu0
    %v462 = vmax.f32 %v451, 0.0
    %v463 = vmax.f32 %v454, 0.0
    %v464 = vmax.f32 %v457, 0.0
    %v465 = vmax.f32 %v460, 0.0
    %v466 = vmul.f32 %v462, %v257
    %v467 = vmul.f32 %v463, %v262
    %v468 = vmul.f32 %v464, %v267
    %v469 = vmul.f32 %v465, %v272
    %v470 = vadd.f32 %v466, %v467
    %v471 = vadd.f32 %v470, %v468
    %v472 = vadd.f32 %v471, %v469
    %v473 = vrot.slane %v472, 4
    %v474 = vadd.f32 %v472, %v473
    %v475 = vrot.slane %v474, 2
    %v476 = vadd.f32 %v474, %v475
    %v477 = vrot.slane %v476, 1
    %v478 = vadd.f32 %v476, %v477
    %v479 = vadd.f32 %v478, %v292
    %480 = vst [vmem:[#allocation1] ss:$2 sm:$0xff] %v40
    %v481 = vld.sshfl [vmem:[#allocation1] sm:$0xff pattern:$0x75316420]
    %v482 = vld.sshfl [vmem:[#allocation1 + $0x8] sm:$0xff pattern:$0x75316420]
    %483 = vrot.lane.b32.xlu0 %v481, 127
    %v484 = vpop.permute.xlu0 %483
    %485 = vrot.lane.b32.xlu0 %v482, 127
    %v486 = vpop.permute.xlu0 %485
    %vm487 = vcmask 1039360
    %v488 = vsel %vm487, %v484, %v486
    %v489 = vsel %vm152, %v488, 0
    %491 = vmatpush.msra.mxu0 0.0
    %492 = vmatpush.msra.mxu0 0.0
    %493 = vmatpush.msra.mxu0 0.0
    %494 = vmatpush.msra.mxu0 0.0
    %495 = vmatpush.msra.mxu0 0.0
    %496 = vmatpush.msra.mxu0 0.0
    %497 = vmatpush.msra.mxu0 0.0
    %498 = vmatpush.msra.mxu0 0.0
    %499 = vmatpush.msra.mxu0 0.0
    %500 = vmatpush.msra.mxu0 0.0
    %501 = vmatpush.msra.mxu0 0.0
    %502 = vmatpush.msra.mxu0 0.0
    %503 = vmatpush.msra.mxu0 0.0
    %504 = vmatpush.msra.mxu0 0.0
    %505 = vmatpush.msra.mxu0 0.0
    %506 = vmatpush.msra.mxu0 %v489
    %507 = vmatmul.f32.gmra.mxu0 %v141
    %v508 = vpop.f32.mrf.mxu0
    %v509 = vadd.f32 %v101, %v508
    %510 = vmatmul.f32.gmra.mxu0 %v144
    %v511 = vpop.f32.mrf.mxu0
    %v512 = vadd.f32 %v104, %v511
    %513 = vmatmul.f32.gmra.mxu0 %v147
    %v514 = vpop.f32.mrf.mxu0
    %v515 = vadd.f32 %v107, %v514
    %516 = vmatmul.f32.gmra.mxu0 %v150
    %v517 = vpop.f32.mrf.mxu0
    %v518 = vadd.f32 %v110, %v517
    %519 = vdwg.mxu0
    %v520 = vmax.f32 %v509, 0.0
    %v521 = vmax.f32 %v512, 0.0
    %v522 = vmax.f32 %v515, 0.0
    %v523 = vmax.f32 %v518, 0.0
    %524 = vmatpush.msra.mxu0 0.0
    %525 = vmatpush.msra.mxu0 0.0
    %526 = vmatpush.msra.mxu0 0.0
    %527 = vmatpush.msra.mxu0 0.0
    %528 = vmatpush.msra.mxu0 0.0
    %529 = vmatpush.msra.mxu0 0.0
    %530 = vmatpush.msra.mxu0 0.0
    %531 = vmatpush.msra.mxu0 0.0
    %532 = vmatpush.msra.mxu0 0.0
    %533 = vmatpush.msra.mxu0 0.0
    %534 = vmatpush.msra.mxu0 0.0
    %535 = vmatpush.msra.mxu0 0.0
    %536 = vmatpush.msra.mxu0 %v523
    %537 = vmatpush.msra.mxu0 %v522
    %538 = vmatpush.msra.mxu0 %v521
    %539 = vmatpush.msra.mxu0 %v520
    %540 = vmatmul.f32.gmra.mxu0 %v210
    %v541 = vpop.f32.mrf.mxu0
    %v542 = vadd.f32 %v191, %v541
    %543 = vmatmul.f32.gmra.mxu0 %v213
    %v544 = vpop.f32.mrf.mxu0
    %v545 = vadd.f32 %v196, %v544
    %546 = vmatmul.f32.gmra.mxu0 %v216
    %v547 = vpop.f32.mrf.mxu0
    %v548 = vadd.f32 %v201, %v547
    %549 = vmatmul.f32.gmra.mxu0 %v219
    %v550 = vpop.f32.mrf.mxu0
    %v551 = vadd.f32 %v206, %v550
    %552 = vdwg.mxu0
    %v553 = vmax.f32 %v542, 0.0
    %v554 = vmax.f32 %v545, 0.0
    %v555 = vmax.f32 %v548, 0.0
    %v556 = vmax.f32 %v551, 0.0
    %v557 = vmul.f32 %v553, %v257
    %v558 = vmul.f32 %v554, %v262
    %v559 = vmul.f32 %v555, %v267
    %v560 = vmul.f32 %v556, %v272
    %v561 = vadd.f32 %v557, %v558
    %v562 = vadd.f32 %v561, %v559
    %v563 = vadd.f32 %v562, %v560
    %v564 = vrot.slane %v563, 4
    %v565 = vadd.f32 %v563, %v564
    %v566 = vrot.slane %v565, 2
    %v567 = vadd.f32 %v565, %v566
    %v568 = vrot.slane %v567, 1
    %v569 = vadd.f32 %v567, %v568
    %v570 = vadd.f32 %v569, %v292
    %v571 = vmax.f32 %v479, %v570
    %v572 = vsub.f32 %v479, %v571
    %v573 = vmul.f32 %v572, 1.442695
    %v574 = vpow.pop %v573
    %v575 = vadd.f32 %v574, 0.0
    %v576 = vsub.f32 %v570, %v571
    %v577 = vmul.f32 %v576, 1.442695
    %v578 = vpow.pop %v577
    %v579 = vadd.f32 %v575, %v578
    %v580 = vlog2.pop %v579
    %v581 = vmul.f32 %v580, 0.6931472
    %v582 = vadd.f32 %v571, %v581
    %v583 = vadd.f32 %v582, -0.6931472
    %v584 = vsub.f32 0.0, %v397
    %v585 = vmax.f32 %v584, 0.0
    %v586 = vand.u32 2147483647, %v584
    %v587 = vsub.f32 0.0, %v586
    %v588 = vmul.f32 %v587, 1.442695
    %v589 = vpow.pop %v588
    %v590 = vadd.f32 %v589, 1.0
    %v591 = vlog2.pop %v590
    %v592 = vmul.f32 %v591, 0.6931472
    %v593 = vmul.f32 -0.5, %v589
    %v594 = vadd.f32 %v593, 1.0
    %v595 = vmul.f32 %v594, %v589
    %v596 = vand.u32 2147483647, %v589
    %vm597 = vcmp.lt.f32.partialorder %v596, 0.0004427343
    %v598 = vsel %vm597, %v595, %v592
    %v599 = vadd.f32 %v585, %v598
    %v600 = vmax.f32 %v583, 0.0
    %v601 = vand.u32 2147483647, %v583
    %v602 = vsub.f32 0.0, %v601
    %v603 = vmul.f32 %v602, 1.442695
    %v604 = vpow.pop %v603
    %v605 = vadd.f32 %v604, 1.0
    %v606 = vlog2.pop %v605
    %v607 = vmul.f32 %v606, 0.6931472
    %v608 = vmul.f32 -0.5, %v604
    %v609 = vadd.f32 %v608, 1.0
    %v610 = vmul.f32 %v609, %v604
    %v611 = vand.u32 2147483647, %v604
    %vm612 = vcmp.lt.f32.partialorder %v611, 0.0004427343
    %v613 = vsel %vm612, %v610, %v607
    %v614 = vadd.f32 %v600, %v613
    %v615 = vlaneseq
    %v616 = vand.u32 %v615, 127
    %v617 = vstv %s35
    %v618 = vadd.s32 %v616, %v617
    %vm619 = vcmp.lt.s32.totalorder %v618, 8
    %v620 = vsel %vm619, 1, 0
    %v621 = vcvt.s32.f32 %v620
    %v622 = vmul.f32 %v599, %v621
    %v623 = vmul.f32 %v614, %v621
    %v624 = vsub.f32 0.0, %v599
    %v625 = vmul.f32 %v624, 1.442695
    %v626 = vpow.pop %v625
    %v627 = vsub.f32 0.0, %v614
    %v628 = vmul.f32 %v627, 1.442695
    %v629 = vpow.pop %v628
    %v630 = vsub.f32 %v626, %v629
    %v631 = vmul.f32 %v630, %v621
    %vm632 = vcmask 1040384
    %v633 = vsel %vm632, %v622, %v623
    %vm634 = vcmask 1041408
    %v635 = vsel %vm634, %v633, %v631
    %vm636 = vcmask 1042432
    %v637 = vsel %vm636, %v635, 0.0
    %638 = vadd.xlane.f32.xlu0 %v637
    %v639 = vpop.xlane.xlu0 %638
    %vm640 = vcmp.eq.s32.totalorder %v616, 0
    %v641 = vsel %vm640, %v639, 0.0
    %642 = vst [vmem:[#allocation3] sm:$0xff] %v641
    // Predicated region
    $region38: #{tpu_custom_call.1} parent=1 // pred_check
      _
    $region39: #{tpu_custom_call.1} parent=1 // pred_check_branch
      %644 = sbr.rel (0) target = $region41
    $region40: #{tpu_custom_call.1} parent=1 // pred_region
      %646 = vsyncadd [#allocation4], 0
      %s648 = sshll.u32 [#allocation3], 4
      %s649 = int_to_ptr.vmem [resolvable:$true] %s648
      %s650 = sshll.u32 %s9, 4
      %s651 = int_to_ptr.hbm [resolvable:$true] %s650
      %653 = dma.vmem_to_hbm [thread:$0]  %s649, 128, %s651, [#allocation4]
    $region41: #{tpu_custom_call.1} parent=1 // pred_fallthru
      _
    // Predicated region
    $region42: #{tpu_custom_call.1} parent=1 // pred_check
      _
    $region43: #{tpu_custom_call.1} parent=1 // pred_check_branch
      %655 = sbr.rel (0) target = $region45
    $region44: #{tpu_custom_call.1} parent=1 // pred_region
      %657 = dma.done [#allocation4], 128
    $region45: #{tpu_custom_call.1} parent=1 // pred_fallthru
      _
    %658 = vsyncpa [#allocation4], 1

</llo_original>
